<compile_context>
chip_gen: v7x
topology: tpu7x:2x2x1
jax: 0.10.0
libtpu: 0.0.40
codegen_flags: <defaults>
</compile_context>

<pallas_src>
import numpy as np
import jax
import jax.numpy as jnp
from jax.experimental import pallas as pl
from jax.experimental.pallas import tpu as pltpu

# sym2 reconstruction filters (pywt.Wavelet('sym2').rec_lo / rec_hi)
SYM2_REC_LO = np.array(
    [0.48296291314469025, 0.836516303737469, 0.22414386804185735, -0.12940952255092145],
    dtype=np.float64,
)
SYM2_REC_HI = np.array(
    [-0.12940952255092145, -0.22414386804185735, 0.836516303737469, -0.48296291314469025],
    dtype=np.float64,
)


def synthesis_matrix(n, g):
    """(2n, n) matrix M s.t. M @ x == sfb1d upsample-filter branch for filter g,
    with periodization wrap and roll(1 - L//2), matching pytorch_wavelets."""
    L = len(g)
    N = 2 * n
    full = np.zeros((N + L - 2, n), dtype=np.float64)
    for j in range(n):
        for t in range(L):
            full[2 * j + t, j] += g[t]          # conv_transpose1d, stride 2
    full[: L - 2, :] += full[N : N + L - 2, :]  # periodization wrap
    M = full[:N, :]
    M = np.roll(M, 1 - L // 2, axis=0)          # final roll
    return M.astype(np.float32)


def _choose_cb(n, two_w, max_lanes=1024):
    """Pick how many planes to pack per grid step.

    Prefer: keep >= 2 grid steps (v7x dual TensorCore), lane width >= 128 (unmasked
    stores), lane width around 512 (good block-size regime), and cap the lane width so
    the block-diagonal row-synthesis matrix ((cb*2W)^2 f32) stays small in VMEM.
    """
    best, best_key = 1, None
    for d in range(1, n + 1):
        if n % d:
            continue
        lanes = d * two_w
        if lanes > max_lanes and d != 1:
            continue
        key = (n // d >= 2, lanes >= 128, min(lanes, 512), -lanes)
        if best_key is None or key > best_key:
            best, best_key = d, key
    return best


def _idwt_kernel(s_ref, gc_ref, grbd_ref, o_ref):
    # s_ref:    (2H, Cb*2W)      Cb band planes S = [[LL, HL], [LH, HH]], packed along lanes
    # gc_ref:   (2H, 2H)         fused column-synthesis matrix [G0c | G1c]
    # grbd_ref: (Cb*2W, Cb*2W)   block-diagonal fused row-synthesis matrix (Cb blocks of Gr)
    # o_ref:    (2H, Cb*2W)      reconstructed planes, packed along lanes
    t = jnp.dot(gc_ref[...], s_ref[...], preferred_element_type=jnp.float32)
    y = jnp.dot(t, grbd_ref[...], preferred_element_type=jnp.float32)
    o_ref[...] = y.astype(o_ref.dtype)


def wave_up(x, cb=None, compute_dtype=jnp.float32):
    """x: (B, 4*C, H, W)  ->  (B, C, 2H, 2W) float32 (sym2 periodization IDWT)."""
    B, C4, H, W = x.shape
    assert C4 % 4 == 0
    C = C4 // 4
    N = B * C
    H2, W2 = 2 * H, 2 * W

    # _Itransformer: (B, 4C, H, W) -> (B, C, 4, H, W); band 0 = LL, bands 1..3 = LH, HL, HH.
    bands = x.reshape(B, C, 4, H, W).reshape(N, 4, H, W).astype(compute_dtype)

    # Assemble the quad plane S[n] = [[LL, HL], [LH, HH]] of shape (2H, 2W).
    # bands.reshape(N,2,2,H,W) indices (n, p, q, h, w) with band = 2p + q; the quad
    # position is (row_block, col_block) = (q, p), so transpose to (n, q, h, p, w).
    s = bands.reshape(N, 2, 2, H, W).transpose(0, 2, 3, 1, 4).reshape(N, H2, W2)

    # Pack Cb planes along the lane (width) axis per grid step.
    if cb is None:
        cb = _choose_cb(N, W2)
    assert N % cb == 0, f"cb={cb} must divide B*C={N}"
    G = N // cb
    lanes = cb * W2
    s_packed = s.reshape(G, cb, H2, W2).transpose(0, 2, 1, 3).reshape(G, H2, lanes)

    # Fused synthesis matrices (built on host with numpy, tiny).
    g0c = synthesis_matrix(H, SYM2_REC_LO)                     # (2H, H)
    g1c = synthesis_matrix(H, SYM2_REC_HI)                     # (2H, H)
    gc = np.concatenate([g0c, g1c], axis=1)                    # (2H, 2H)
    g0r = synthesis_matrix(W, SYM2_REC_LO)                     # (2W, W)
    g1r = synthesis_matrix(W, SYM2_REC_HI)                     # (2W, W)
    gr = np.concatenate([g0r.T, g1r.T], axis=0)                # (2W, 2W)
    grbd = np.kron(np.eye(cb, dtype=np.float32), gr)           # (cb*2W, cb*2W), block-diag

    gc_dev = jnp.asarray(gc, dtype=compute_dtype)
    grbd_dev = jnp.asarray(grbd, dtype=compute_dtype)

    out_packed = pl.pallas_call(
        _idwt_kernel,
        out_shape=jax.ShapeDtypeStruct((G, H2, lanes), jnp.float32),
        grid_spec=pltpu.PrefetchScalarGridSpec(
            num_scalar_prefetch=0,
            grid=(G,),
            in_specs=[
                # Batched, lane-packed band planes: block = full trailing dims, squeezed grid dim.
                pl.BlockSpec((pl.Squeezed(), H2, lanes), lambda i: (i, 0, 0)),
                # Constant filter operands (same block every step -> not re-fetched).
                pl.BlockSpec((H2, H2), lambda i: (0, 0)),
                pl.BlockSpec((lanes, lanes), lambda i: (0, 0)),
            ],
            out_specs=pl.BlockSpec((pl.Squeezed(), H2, lanes), lambda i: (i, 0, 0)),
        ),
        compiler_params=pltpu.CompilerParams(
            dimension_semantics=("parallel",),          # shards grid steps across v7x TCs
            vmem_limit_bytes=32 * 1024 * 1024,          # safe on v5e/v6e/v7x; usage here is ~1 MiB
        ),
    )(s_packed, gc_dev, grbd_dev)

    # Unpack lanes back to planes and restore NCHW.
    out = (
        out_packed.reshape(G, H2, cb, W2)
        .transpose(0, 2, 1, 3)
        .reshape(B, C, H2, W2)
    )
    return out


# ------------------ independent numpy reference (pytorch_wavelets semantics) ------------------
def _synth_1d_np(lo, hi, g0, g1):
    n = lo.shape[0]
    L = len(g0)
    N = 2 * n
    y = np.zeros(N + L - 2, dtype=np.float64)
    for j in range(n):
        for t in range(L):
            y[2 * j + t] += lo[j] * g0[t] + hi[j] * g1[t]
    y[: L - 2] += y[N : N + L - 2]
    y = y[:N]
    return np.roll(y, 1 - L // 2)


def wave_up_ref(x_np):
    B, C4, H, W = x_np.shape
    C = C4 // 4
    y = x_np.reshape(B, C, 4, H, W).astype(np.float64)
    out = np.zeros((B, C, 2 * H, 2 * W), dtype=np.float64)
    for b in range(B):
        for c in range(C):
            ll, lh, hl, hh = y[b, c, 0], y[b, c, 1], y[b, c, 2], y[b, c, 3]
            lo = np.zeros((2 * H, W))
            hi = np.zeros((2 * H, W))
            for w in range(W):
                lo[:, w] = _synth_1d_np(ll[:, w], lh[:, w], SYM2_REC_LO, SYM2_REC_HI)
                hi[:, w] = _synth_1d_np(hl[:, w], hh[:, w], SYM2_REC_LO, SYM2_REC_HI)
            for r in range(2 * H):
                out[b, c, r, :] = _synth_1d_np(lo[r, :], hi[r, :], SYM2_REC_LO, SYM2_REC_HI)
    return out.astype(np.float32)


if __name__ == "__main__":
    key = jax.random.PRNGKey(0)
    B, C, H, W = 2, 4, 16, 16           # input channels = 4*C = 16
    x = jax.random.normal(key, (B, 4 * C, H, W), dtype=jnp.float32)

    out = wave_up(x)                    # cb auto-selected: 4 planes/step, 128 lanes, grid=(2,)
    out = jax.block_until_ready(out)

    ref = wave_up_ref(np.asarray(x))
    assert out.shape == (B, C, 2 * H, 2 * W)
    np.testing.assert_allclose(np.asarray(out), ref, atol=1e-4, rtol=1e-4)

    print("KERNEL_OK")
</pallas_src>

<mosaic_0001>
module attributes {stable_mosaic.version = 11 : i64} {
  func.func @_idwt_kernel(%arg0: i32, %arg1: memref<1x32x128xf32, #tpu.memory_space<vmem>>, %arg2: memref<32x32xf32, #tpu.memory_space<vmem>>, %arg3: memref<128x128xf32, #tpu.memory_space<vmem>>, %arg4: memref<1x32x128xf32, #tpu.memory_space<vmem>>) attributes {dimension_semantics = [#tpu.dimension_semantics<parallel>], iteration_bounds = array<i64: 2>, scalar_prefetch = 0 : i64, scratch_operands = 0 : i64, tpu.core_type = #tpu.core_type<tc>, window_params = [{transform_indices = @transform_0, window_bounds = array<i64: 1, 32, 128>}, {pipeline_mode = #tpu.pipeline_mode<synchronous>, transform_indices = @transform_1, window_bounds = array<i64: 32, 32>}, {pipeline_mode = #tpu.pipeline_mode<synchronous>, transform_indices = @transform_2, window_bounds = array<i64: 128, 128>}, {transform_indices = @transform_3, window_bounds = array<i64: 1, 32, 128>}]} {
    %c0 = arith.constant 0 : index
    %c0_0 = arith.constant 0 : index
    %0 = vector.load %arg2[%c0, %c0_0] : memref<32x32xf32, #tpu.memory_space<vmem>>, vector<32x32xf32>
    %c0_1 = arith.constant 0 : index
    %c0_2 = arith.constant 0 : index
    %c0_3 = arith.constant 0 : index
    %1 = vector.load %arg1[%c0_1, %c0_2, %c0_3] : memref<1x32x128xf32, #tpu.memory_space<vmem>>, vector<1x32x128xf32>
    %2 = vector.shape_cast %1 : vector<1x32x128xf32> to vector<32x128xf32>
    %cst = arith.constant dense<0.000000e+00> : vector<32x128xf32>
    %3 = tpu.matmul %0, %2, %cst {dimension_numbers = #tpu.dot_dimension_numbers<[1], [0], [0], [1], [0, 0, 1, 1], [], []>} : vector<32x32xf32>, vector<32x128xf32>, vector<32x128xf32> -> vector<32x128xf32>
    %c0_4 = arith.constant 0 : index
    %c0_5 = arith.constant 0 : index
    %4 = vector.load %arg3[%c0_4, %c0_5] : memref<128x128xf32, #tpu.memory_space<vmem>>, vector<128x128xf32>
    %cst_6 = arith.constant dense<0.000000e+00> : vector<32x128xf32>
    %5 = tpu.matmul %3, %4, %cst_6 {dimension_numbers = #tpu.dot_dimension_numbers<[1], [0], [0], [1], [0, 0, 1, 1], [], []>} : vector<32x128xf32>, vector<128x128xf32>, vector<32x128xf32> -> vector<32x128xf32>
    %c0_7 = arith.constant 0 : index
    %c0_8 = arith.constant 0 : index
    %c0_9 = arith.constant 0 : index
    %6 = vector.load %arg4[%c0_7, %c0_8, %c0_9] : memref<1x32x128xf32, #tpu.memory_space<vmem>>, vector<1x32x128xf32>
    %7 = vector.shape_cast %6 : vector<1x32x128xf32> to vector<32x128xf32>
    %8 = vector.shape_cast %5 : vector<32x128xf32> to vector<1x32x128xf32>
    tpu.vector_store %arg4[%c0_7, %c0_8, %c0_9], %8 {strides = array<i32>} : memref<1x32x128xf32, #tpu.memory_space<vmem>>, vector<1x32x128xf32>,
    return
  }
  func.func @transform_0(%arg0: i32) -> (i32, i32, i32) {
    %c0_i32 = arith.constant 0 : i32
    %c0_i32_0 = arith.constant 0 : i32
    %c0_i32_1 = arith.constant 0 : i32
    return %arg0, %c0_i32, %c0_i32_0 : i32, i32, i32
  }
  func.func @transform_1(%arg0: i32) -> (i32, i32) {
    %c0_i32 = arith.constant 0 : i32
    %c0_i32_0 = arith.constant 0 : i32
    %c0_i32_1 = arith.constant 0 : i32
    return %c0_i32, %c0_i32_0 : i32, i32
  }
  func.func @transform_2(%arg0: i32) -> (i32, i32) {
    %c0_i32 = arith.constant 0 : i32
    %c0_i32_0 = arith.constant 0 : i32
    %c0_i32_1 = arith.constant 0 : i32
    return %c0_i32, %c0_i32_0 : i32, i32
  }
  func.func @transform_3(%arg0: i32) -> (i32, i32, i32) {
    %c0_i32 = arith.constant 0 : i32
    %c0_i32_0 = arith.constant 0 : i32
    %c0_i32_1 = arith.constant 0 : i32
    return %arg0, %c0_i32, %c0_i32_0 : i32, i32, i32
  }
}

</mosaic_0001>

<llo_original>
// kernel: tpu_custom_call.1
$region0: #{tpu_custom_call.1}
  #allocation0 [shape = 'u32[]', space=smem, size = 0x4, offset = 0x4, fixed_abs, tag = 'smem constant byte address 0x4 - core index']
  #allocation1 [shape = 'u32[144,128]{1,0:T(1,128)}', space=vmem, size = 0x12000, scoped, tag = 'internal scratch']
  %s0 = inlined_call_operand.hbm [shape: f32[2,32,128], index: 0, kind: input, shape index: {}]
  %s1 = inlined_call_operand.hbm [shape: f32[32,32], index: 1, kind: input, shape index: {}]
  %s2 = inlined_call_operand.hbm [shape: f32[128,128], index: 2, kind: input, shape index: {}]
  %s3 = inlined_call_operand.hbm [shape: f32[2,32,128], index: 3, kind: output, shape index: {}]
  %s4 = sld [smem:[#allocation0]]
  $region57: #{tpu_custom_call.1} parent=0
    _
  %s6 = ssub.s32 1, %s4
  %s7 = scalar_select 0, %s6, %s4
  $region1: #{tpu_custom_call.1} parent=0
    #allocation2 [shape = 'u8[32768]{0}', space=vmem, size = 0x8000, scoped, tag = 'input window, operand 0']
    #allocation3 [shape = 's32[2]{0}', space=sflag, size = 0x8, scoped, tag = 'scoped memory for tpu_custom_call.1']
    #allocation4 [shape = 's32[2]{0}', space=sflag, size = 0x8, scoped, tag = 'scoped memory for tpu_custom_call.1']
    #allocation5 [shape = 'u8[16384]{0}', space=vmem, size = 0x4000, scoped, tag = 'input window, operand 1, single buffered']
    #allocation6 [shape = 's32[1]{0}', space=sflag, size = 0x4, scoped, tag = 'scoped memory for tpu_custom_call.1']
    #allocation7 [shape = 'u8[65536]{0}', space=vmem, size = 0x10000, scoped, tag = 'input window, operand 2, single buffered']
    #allocation8 [shape = 'u8[32768]{0}', space=vmem, size = 0x8000, scoped, tag = 'output window, operand 0']
    %8 = vsyncpa [#allocation3], 0
    %s9 = scalar_lea.sflag [#allocation3], 1
    %10 = vsyncpa %s9, 0
    %11 = vsyncpa [#allocation6], 0
    %12 = vsyncpa [#allocation4], 0
    %s13 = scalar_lea.sflag [#allocation4], 1
    %14 = vsyncpa %s13, 0
    loop: start=0, step=1, limit=4
    $region2: #{tpu_custom_call.1} parent=1 // loop_pre_header
      _
    $region3: #{tpu_custom_call.1} parent=1 // loop_header
      %s16 = sphi 0, %s20
      %p17 = scmp.ge.s32.totalorder %s16, 4
      %s26 = sphi 0, %s28
      %s29 = sphi 0, %s26
      %s30 = sphi 0, %s29
      %s46 = sphi 0, %s30
      %s50 = sphi 0, %s50
      %s52 = sphi 0, %s50
      %s53 = sphi 0, %s52
      %s67 = sphi 0, %s53
      %s71 = sphi 0, %s71
      %s73 = sphi 0, %s71
      %s74 = sphi 0, %s73
      %s88 = sphi 0, %s74
      %s94 = sphi 0, %s96
      %s97 = sphi 0, %s94
      %s98 = sphi 0, %s97
      %s114 = sphi 0, %s98
    $region4: #{tpu_custom_call.1} parent=1 // loop_header_branch
      %19 = sbr.rel (%p17) target = $region8
    $region5: #{tpu_custom_call.1} parent=1 // loop_body
      %s21 = ssub.s32 %s16, 1
      %s22 = ssub.s32 %s16, 2
      %s23 = sadd.s32 %s16, 1
      %s24 = ssub.s32 %s16, %s23
      %p25 = scmp.eq.s32.totalorder %s24, 0
      %s27 = sadd.s32 %s26, 1
      %s28 = scalar_select %p25, %s26, %s27
      %p31 = pneg %p25
      %p32 = scmp.eq.s32.totalorder %s16, 1
      %p33 = por %p31, %p32
      %p34 = scmp.ne.s32.totalorder %s26, %s29
      %p35 = scmp.eq.s32.totalorder %s16, 0
      %p36 = por %p34, %p35
      %p37 = scmp.ne.s32.totalorder %s26, %s29
      %p38 = scmp.eq.s32.totalorder %s21, 1
      %p39 = por %p37, %p38
      %p40 = scmp.ne.s32.totalorder %s29, %s30
      %p41 = scmp.eq.s32.totalorder %s21, 0
      %p42 = por %p40, %p41
      %p43 = scmp.ne.s32.totalorder %s29, %s30
      %p44 = scmp.eq.s32.totalorder %s22, 1
      %p45 = por %p43, %p44
      %p47 = scmp.ne.s32.totalorder %s30, %s46
      %p48 = scmp.eq.s32.totalorder %s22, 0
      %p49 = por %p47, %p48
      %s51 = sadd.s32 %s50, 1
      %p54 = scmp.eq.s32.totalorder %s16, 1
      %p55 = scmp.ne.s32.totalorder %s50, %s52
      %p56 = scmp.eq.s32.totalorder %s16, 0
      %p57 = por %p55, %p56
      %p58 = scmp.ne.s32.totalorder %s50, %s52
      %p59 = scmp.eq.s32.totalorder %s21, 1
      %p60 = por %p58, %p59
      %p61 = scmp.ne.s32.totalorder %s52, %s53
      %p62 = scmp.eq.s32.totalorder %s21, 0
      %p63 = por %p61, %p62
      %p64 = scmp.ne.s32.totalorder %s52, %s53
      %p65 = scmp.eq.s32.totalorder %s22, 1
      %p66 = por %p64, %p65
      %p68 = scmp.ne.s32.totalorder %s53, %s67
      %p69 = scmp.eq.s32.totalorder %s22, 0
      %p70 = por %p68, %p69
      %s72 = sadd.s32 %s71, 1
      %p75 = scmp.eq.s32.totalorder %s16, 1
      %p76 = scmp.ne.s32.totalorder %s71, %s73
      %p77 = scmp.eq.s32.totalorder %s16, 0
      %p78 = por %p76, %p77
      %p79 = scmp.ne.s32.totalorder %s71, %s73
      %p80 = scmp.eq.s32.totalorder %s21, 1
      %p81 = por %p79, %p80
      %p82 = scmp.ne.s32.totalorder %s73, %s74
      %p83 = scmp.eq.s32.totalorder %s21, 0
      %p84 = por %p82, %p83
      %p85 = scmp.ne.s32.totalorder %s73, %s74
      %p86 = scmp.eq.s32.totalorder %s22, 1
      %p87 = por %p85, %p86
      %p89 = scmp.ne.s32.totalorder %s74, %s88
      %p90 = scmp.eq.s32.totalorder %s22, 0
      %p91 = por %p89, %p90
      %s92 = ssub.s32 %s16, %s23
      %p93 = scmp.eq.s32.totalorder %s92, 0
      %s95 = sadd.s32 %s94, 1
      %s96 = scalar_select %p93, %s94, %s95
      %p99 = pneg %p93
      %p100 = scmp.eq.s32.totalorder %s16, 1
      %p101 = por %p99, %p100
      %p102 = scmp.ne.s32.totalorder %s94, %s97
      %p103 = scmp.eq.s32.totalorder %s16, 0
      %p104 = por %p102, %p103
      %p105 = scmp.ne.s32.totalorder %s94, %s97
      %p106 = scmp.eq.s32.totalorder %s21, 1
      %p107 = por %p105, %p106
      %p108 = scmp.ne.s32.totalorder %s97, %s98
      %p109 = scmp.eq.s32.totalorder %s21, 0
      %p110 = por %p108, %p109
      %p111 = scmp.ne.s32.totalorder %s97, %s98
      %p112 = scmp.eq.s32.totalorder %s22, 1
      %p113 = por %p111, %p112
      %p115 = scmp.ne.s32.totalorder %s98, %s114
      %p116 = scmp.eq.s32.totalorder %s22, 0
      %p117 = por %p115, %p116
      %p118 = scmp.le.s32.totalorder 1, %s16
      %p119 = scmp.lt.s32.totalorder %s16, 3
      %p120 = pnand %p118, %p119
      %p121 = pneg %p120
      // Predicated region
      $region9: #{tpu_custom_call.1} parent=5 // pred_check
        _
      $region10: #{tpu_custom_call.1} parent=5 // pred_check_branch
        %123 = sbr.rel (%p120) target = $region12
      $region11: #{tpu_custom_call.1} parent=5 // pred_region
        %s124 = ssub.s32 %s16, 1
        // Predicated region
        $region13: #{tpu_custom_call.1} parent=11 // pred_check
          %p125 = pneg %p63
        $region14: #{tpu_custom_call.1} parent=11 // pred_check_branch
          %127 = sbr.rel (%p125) target = $region16
        $region15: #{tpu_custom_call.1} parent=11 // pred_region
          %s129 = ssub.s32 512, 512
          %130 = vsyncadd [#allocation6], %s129
          %s131 = sshll.u32 [#allocation5], 4
          %s132 = int_to_ptr.vmem [resolvable:$true] %s131
          %137 = dma.hbm_to_vmem [thread:$0]  %s1, 512, %s132, [#allocation6], 128, 128, 8
        $region16: #{tpu_custom_call.1} parent=11 // pred_fallthru
          _
        // Predicated region
        $region17: #{tpu_custom_call.1} parent=11 // pred_check
          %p138 = pneg %p84
        $region18: #{tpu_custom_call.1} parent=11 // pred_check_branch
          %140 = sbr.rel (%p138) target = $region20
        $region19: #{tpu_custom_call.1} parent=11 // pred_region
          %s142 = ssub.s32 2048, 2048
          %143 = vsyncadd [#allocation6], %s142
          %s144 = sshll.u32 [#allocation7], 4
          %s145 = int_to_ptr.vmem [resolvable:$true] %s144
          %150 = dma.hbm_to_vmem [thread:$0]  %s2, 2048, %s145, [#allocation6], 128, 128, 8
        $region20: #{tpu_custom_call.1} parent=11 // pred_fallthru
          _
      $region12: #{tpu_custom_call.1} parent=5 // pred_fallthru
        _
      %p151 = scmp.lt.s32.totalorder %s16, 2
      // Predicated region
      $region21: #{tpu_custom_call.1} parent=5 // pred_check
        %p152 = pneg %p151
      $region22: #{tpu_custom_call.1} parent=5 // pred_check_branch
        %154 = sbr.rel (%p152) target = $region24
      $region23: #{tpu_custom_call.1} parent=5 // pred_region
        // Predicated region
        $region25: #{tpu_custom_call.1} parent=23 // pred_check
          %p155 = pneg %p36
        $region26: #{tpu_custom_call.1} parent=23 // pred_check_branch
          %157 = sbr.rel (%p155) target = $region28
        $region27: #{tpu_custom_call.1} parent=23 // pred_region
          %s158 = sand.u32 %s26, 1
          %s159 = scalar_lea.sflag [#allocation3], %s158
          %s160 = sand.u32 %s26, 1
          %s161 = smul.addr %s160, 32
          %s162 = scalar_lea.vmem [#allocation2], %s161
          %s164 = ssub.s32 512, 512
          %165 = vsyncadd %s159, %s164
          %s166 = smul.addr %s16, 4
          %s167 = smul.addr %s166, 128
          %s168 = scalar_lea.hbm %s0, %s167
          %s169 = sshll.u32 %s162, 4
          %s170 = int_to_ptr.vmem [resolvable:$true] %s169
          %175 = dma.hbm_to_vmem [thread:$0]  %s168, 512, %s170, %s159, 128, 128, 8
        $region28: #{tpu_custom_call.1} parent=23 // pred_fallthru
          _
      $region24: #{tpu_custom_call.1} parent=5 // pred_fallthru
        _
      %p176 = scmp.le.s32.totalorder 1, %s16
      %p177 = scmp.lt.s32.totalorder %s16, 3
      %p178 = pnand %p176, %p177
      %p179 = pneg %p178
      // Predicated region
      $region29: #{tpu_custom_call.1} parent=5 // pred_check
        _
      $region30: #{tpu_custom_call.1} parent=5 // pred_check_branch
        %181 = sbr.rel (%p178) target = $region32
      $region31: #{tpu_custom_call.1} parent=5 // pred_region
        %s182 = ssub.s32 %s16, 1
        %s183 = sand.u32 %s29, 1
        %s184 = scalar_lea.sflag [#allocation3], %s183
        %s185 = sand.u32 %s29, 1
        %s186 = smul.addr %s185, 32
        %s187 = scalar_lea.vmem [#allocation2], %s186
        // Predicated region
        $region33: #{tpu_custom_call.1} parent=31 // pred_check
          %p188 = pneg %p42
        $region34: #{tpu_custom_call.1} parent=31 // pred_check_branch
          %190 = sbr.rel (%p188) target = $region36
        $region35: #{tpu_custom_call.1} parent=31 // pred_region
          %191 = dma.done %s184, 512
        $region36: #{tpu_custom_call.1} parent=31 // pred_fallthru
          _
        // Predicated region
        $region37: #{tpu_custom_call.1} parent=31 // pred_check
          %p192 = pneg %p63
        $region38: #{tpu_custom_call.1} parent=31 // pred_check_branch
          %194 = sbr.rel (%p192) target = $region40
        $region39: #{tpu_custom_call.1} parent=31 // pred_region
          %195 = dma.done [#allocation6], 512
        $region40: #{tpu_custom_call.1} parent=31 // pred_fallthru
          _
        // Predicated region
        $region41: #{tpu_custom_call.1} parent=31 // pred_check
          %p196 = pneg %p84
        $region42: #{tpu_custom_call.1} parent=31 // pred_check_branch
          %198 = sbr.rel (%p196) target = $region44
        $region43: #{tpu_custom_call.1} parent=31 // pred_region
          %199 = dma.done [#allocation6], 2048
        $region44: #{tpu_custom_call.1} parent=31 // pred_fallthru
          _
        %s200 = sand.u32 %s29, 1
        %s201 = scalar_lea.sflag [#allocation3], %s200
        %s202 = sand.u32 %s29, 1
        %s203 = smul.addr %s202, 32
        %s204 = scalar_lea.vmem [#allocation2], %s203
        %p205 = pneg %p42
        %p206 = pneg %p39
        %p207 = pneg %p63
        %p208 = pneg %p60
        %p209 = pneg %p84
        %p210 = pneg %p81
        %p211 = pneg %p110
        %p212 = pneg %p107
        %s213 = sand.u32 %s97, 1
        %s214 = scalar_lea.sflag [#allocation4], %s213
        %s215 = sand.u32 %s97, 1
        %s216 = smul.addr %s215, 32
        %s217 = scalar_lea.vmem [#allocation8], %s216
        %v218 = vld [vmem:[#allocation5] sm:$0xff]
        %v219 = vld [vmem:[#allocation5 + $0x8] sm:$0xff]
        %v220 = vld [vmem:[#allocation5 + $0x10] sm:$0xff]
        %v221 = vld [vmem:[#allocation5 + $0x18] sm:$0xff]
        %v222 = vld [vmem:[%s187] sm:$0xff]
        %v223 = vld [vmem:[%s187 + $0x8] sm:$0xff]
        %v224 = vld [vmem:[%s187 + $0x10] sm:$0xff]
        %v225 = vld [vmem:[%s187 + $0x18] sm:$0xff]
        %vm226 = vcmask 261120
        %v228 = vsel %vm226, %v218, 0
        %v231 = vsel %vm226, %v219, 0
        %v234 = vsel %vm226, %v220, 0
        %v237 = vsel %vm226, %v221, 0
        %239 = vmatprep.subr.mxu0 0.0
        %240 = vmatpush1.msra.mxu0 %v222
        %241 = vmatprep.subr.mxu0 0.0
        %242 = vmatpush1.msra.mxu0 %v223
        %243 = vmatprep.subr.mxu0 0.0
        %244 = vmatpush1.msra.mxu0 %v224
        %245 = vmatprep.subr.mxu0 0.0
        %246 = vmatpush1.msra.mxu0 %v225
        %247 = vmatprep.subr.mxu0 0.0
        %248 = vmatpush1.msra.mxu0 0.0
        %249 = vmatprep.subr.mxu0 0.0
        %250 = vmatpush1.msra.mxu0 0.0
        %251 = vmatprep.subr.mxu0 0.0
        %252 = vmatpush1.msra.mxu0 0.0
        %253 = vmatprep.subr.mxu0 0.0
        %254 = vmatpush1.msra.mxu0 0.0
        %255 = vmatprep.subr.mxu0 0.0
        %256 = vmatpush1.msra.mxu0 0.0
        %257 = vmatprep.subr.mxu0 0.0
        %258 = vmatpush1.msra.mxu0 0.0
        %259 = vmatprep.subr.mxu0 0.0
        %260 = vmatpush1.msra.mxu0 0.0
        %261 = vmatprep.subr.mxu0 0.0
        %262 = vmatpush1.msra.mxu0 0.0
        %263 = vmatprep.subr.mxu0 0.0
        %264 = vmatpush1.msra.mxu0 0.0
        %265 = vmatprep.subr.mxu0 0.0
        %266 = vmatpush1.msra.mxu0 0.0
        %267 = vmatprep.subr.mxu0 0.0
        %268 = vmatpush1.msra.mxu0 0.0
        %269 = vmatprep.subr.mxu0 0.0
        %270 = vmatpush1.msra.mxu0 0.0
        %271 = vmatprep.subr.mxu0 0.0
        %272 = vmatpush1.msra.mxu0 0.0
        %273 = vmatprep.subr.mxu0 0.0
        %274 = vmatpush1.msra.mxu0 0.0
        %275 = vmatprep.subr.mxu0 0.0
        %276 = vmatpush1.msra.mxu0 0.0
        %277 = vmatprep.subr.mxu0 0.0
        %278 = vmatpush1.msra.mxu0 0.0
        %279 = vmatprep.subr.mxu0 0.0
        %280 = vmatpush1.msra.mxu0 0.0
        %281 = vmatprep.subr.mxu0 0.0
        %282 = vmatpush1.msra.mxu0 0.0
        %283 = vmatprep.subr.mxu0 0.0
        %284 = vmatpush1.msra.mxu0 0.0
        %285 = vmatprep.subr.mxu0 0.0
        %286 = vmatpush1.msra.mxu0 0.0
        %287 = vmatprep.subr.mxu0 0.0
        %288 = vmatpush1.msra.mxu0 0.0
        %289 = vmatprep.subr.mxu0 0.0
        %290 = vmatpush1.msra.mxu0 0.0
        %291 = vmatprep.subr.mxu0 0.0
        %292 = vmatpush1.msra.mxu0 0.0
        %293 = vmatprep.subr.mxu0 0.0
        %294 = vmatpush1.msra.mxu0 0.0
        %295 = vmatprep.subr.mxu0 0.0
        %296 = vmatpush1.msra.mxu0 0.0
        %297 = vmatprep.subr.mxu0 0.0
        %298 = vmatpush1.msra.mxu0 0.0
        %299 = vmatprep.subr.mxu0 0.0
        %300 = vmatpush1.msra.mxu0 0.0
        %301 = vmatprep.subr.mxu0 0.0
        %302 = vmatpush1.msra.mxu0 0.0
        %303 = vmatprep.mubr.f32.mxu0 0.0
        %304 = vmatmul.mubr.f32.gmra.mrb[0].mxu0 %v228
        %v305 = vpop.f32.mrb[0].mxu0
        %v306 = vadd.f32 0.0, %v305
        %v307 = vpop.f32.mrb[0].mxu0
        %308 = vmatprep.mubr.f32.mxu0 0.0
        %309 = vmatmul.mubr.f32.gmra.mrb[0].mxu0 %v231
        %v310 = vpop.f32.mrb[0].mxu0
        %v311 = vadd.f32 0.0, %v310
        %v312 = vpop.f32.mrb[0].mxu0
        %313 = vmatprep.mubr.f32.mxu0 0.0
        %314 = vmatmul.mubr.f32.gmra.mrb[0].mxu0 %v234
        %v315 = vpop.f32.mrb[0].mxu0
        %v316 = vadd.f32 0.0, %v315
        %v317 = vpop.f32.mrb[0].mxu0
        %318 = vmatprep.mubr.f32.mxu0 0.0
        %319 = vmatmul.mubr.f32.gmra.mrb[0].mxu0 %v237
        %v320 = vpop.f32.mrb[0].mxu0
        %v321 = vadd.f32 0.0, %v320
        %v322 = vpop.f32.mrb[0].mxu0
        %323 = vdwg.mxu0
        %v324 = vld [vmem:[#allocation7] sm:$0xff]
        %v325 = vld [vmem:[#allocation7 + $0x8] sm:$0xff]
        %v326 = vld [vmem:[#allocation7 + $0x10] sm:$0xff]
        %v327 = vld [vmem:[#allocation7 + $0x18] sm:$0xff]
        %v328 = vld [vmem:[#allocation7 + $0x20] sm:$0xff]
        %v329 = vld [vmem:[#allocation7 + $0x28] sm:$0xff]
        %v330 = vld [vmem:[#allocation7 + $0x30] sm:$0xff]
        %v331 = vld [vmem:[#allocation7 + $0x38] sm:$0xff]
        %v332 = vld [vmem:[#allocation7 + $0x40] sm:$0xff]
        %v333 = vld [vmem:[#allocation7 + $0x48] sm:$0xff]
        %v334 = vld [vmem:[#allocation7 + $0x50] sm:$0xff]
        %v335 = vld [vmem:[#allocation7 + $0x58] sm:$0xff]
        %v336 = vld [vmem:[#allocation7 + $0x60] sm:$0xff]
        %v337 = vld [vmem:[#allocation7 + $0x68] sm:$0xff]
        %v338 = vld [vmem:[#allocation7 + $0x70] sm:$0xff]
        %v339 = vld [vmem:[#allocation7 + $0x78] sm:$0xff]
        %340 = vmatprep.subr.mxu0 0.0
        %341 = vmatpush1.msra.mxu0 %v324
        %342 = vmatprep.subr.mxu0 0.0
        %343 = vmatpush1.msra.mxu0 %v325
        %344 = vmatprep.subr.mxu0 0.0
        %345 = vmatpush1.msra.mxu0 %v326
        %346 = vmatprep.subr.mxu0 0.0
        %347 = vmatpush1.msra.mxu0 %v327
        %348 = vmatprep.subr.mxu0 0.0
        %349 = vmatpush1.msra.mxu0 %v328
        %350 = vmatprep.subr.mxu0 0.0
        %351 = vmatpush1.msra.mxu0 %v329
        %352 = vmatprep.subr.mxu0 0.0
        %353 = vmatpush1.msra.mxu0 %v330
        %354 = vmatprep.subr.mxu0 0.0
        %355 = vmatpush1.msra.mxu0 %v331
        %356 = vmatprep.subr.mxu0 0.0
        %357 = vmatpush1.msra.mxu0 %v332
        %358 = vmatprep.subr.mxu0 0.0
        %359 = vmatpush1.msra.mxu0 %v333
        %360 = vmatprep.subr.mxu0 0.0
        %361 = vmatpush1.msra.mxu0 %v334
        %362 = vmatprep.subr.mxu0 0.0
        %363 = vmatpush1.msra.mxu0 %v335
        %364 = vmatprep.subr.mxu0 0.0
        %365 = vmatpush1.msra.mxu0 %v336
        %366 = vmatprep.subr.mxu0 0.0
        %367 = vmatpush1.msra.mxu0 %v337
        %368 = vmatprep.subr.mxu0 0.0
        %369 = vmatpush1.msra.mxu0 %v338
        %370 = vmatprep.subr.mxu0 0.0
        %371 = vmatpush1.msra.mxu0 %v339
        %372 = vmatprep.subr.mxu0 0.0
        %373 = vmatpush1.msra.mxu0 0.0
        %374 = vmatprep.subr.mxu0 0.0
        %375 = vmatpush1.msra.mxu0 0.0
        %376 = vmatprep.subr.mxu0 0.0
        %377 = vmatpush1.msra.mxu0 0.0
        %378 = vmatprep.subr.mxu0 0.0
        %379 = vmatpush1.msra.mxu0 0.0
        %380 = vmatprep.subr.mxu0 0.0
        %381 = vmatpush1.msra.mxu0 0.0
        %382 = vmatprep.subr.mxu0 0.0
        %383 = vmatpush1.msra.mxu0 0.0
        %384 = vmatprep.subr.mxu0 0.0
        %385 = vmatpush1.msra.mxu0 0.0
        %386 = vmatprep.subr.mxu0 0.0
        %387 = vmatpush1.msra.mxu0 0.0
        %388 = vmatprep.subr.mxu0 0.0
        %389 = vmatpush1.msra.mxu0 0.0
        %390 = vmatprep.subr.mxu0 0.0
        %391 = vmatpush1.msra.mxu0 0.0
        %392 = vmatprep.subr.mxu0 0.0
        %393 = vmatpush1.msra.mxu0 0.0
        %394 = vmatprep.subr.mxu0 0.0
        %395 = vmatpush1.msra.mxu0 0.0
        %396 = vmatprep.subr.mxu0 0.0
        %397 = vmatpush1.msra.mxu0 0.0
        %398 = vmatprep.subr.mxu0 0.0
        %399 = vmatpush1.msra.mxu0 0.0
        %400 = vmatprep.subr.mxu0 0.0
        %401 = vmatpush1.msra.mxu0 0.0
        %402 = vmatprep.subr.mxu0 0.0
        %403 = vmatpush1.msra.mxu0 0.0
        %404 = vmatprep.mubr.f32.mxu0 0.0
        %405 = vmatmul.mubr.f32.gmra.mrb[0].mxu0 %v306
        %v406 = vpop.f32.mrb[0].mxu0
        %v407 = vadd.f32 0.0, %v406
        %v408 = vpop.f32.mrb[0].mxu0
        %409 = vmatprep.mubr.f32.mxu0 0.0
        %410 = vmatmul.mubr.f32.gmra.mrb[0].mxu0 %v311
        %v411 = vpop.f32.mrb[0].mxu0
        %v412 = vadd.f32 0.0, %v411
        %v413 = vpop.f32.mrb[0].mxu0
        %414 = vmatprep.mubr.f32.mxu0 0.0
        %415 = vmatmul.mubr.f32.gmra.mrb[0].mxu0 %v316
        %v416 = vpop.f32.mrb[0].mxu0
        %v417 = vadd.f32 0.0, %v416
        %v418 = vpop.f32.mrb[0].mxu0
        %419 = vmatprep.mubr.f32.mxu0 0.0
        %420 = vmatmul.mubr.f32.gmra.mrb[0].mxu0 %v321
        %v421 = vpop.f32.mrb[0].mxu0
        %v422 = vadd.f32 0.0, %v421
        %v423 = vpop.f32.mrb[0].mxu0
        %424 = vdwg.mxu0
        %425 = vst [vmem:[%s217] sm:$0xff] %v407
        %426 = vst [vmem:[%s217 + $0x8] sm:$0xff] %v412
        %427 = vst [vmem:[%s217 + $0x10] sm:$0xff] %v417
        %428 = vst [vmem:[%s217 + $0x18] sm:$0xff] %v422
        %s429 = sand.u32 %s97, 1
        %s430 = scalar_lea.sflag [#allocation4], %s429
        %s431 = sand.u32 %s97, 1
        %s432 = smul.addr %s431, 32
        %s433 = scalar_lea.vmem [#allocation8], %s432
        // Predicated region
        $region45: #{tpu_custom_call.1} parent=31 // pred_check
          %p434 = pneg %p107
        $region46: #{tpu_custom_call.1} parent=31 // pred_check_branch
          %436 = sbr.rel (%p434) target = $region48
        $region47: #{tpu_custom_call.1} parent=31 // pred_region
          %s438 = ssub.s32 512, 512
          %439 = vsyncadd %s430, %s438
          %s440 = smul.addr %s21, 4
          %s441 = smul.addr %s440, 128
          %s442 = scalar_lea.hbm %s3, %s441
          %s443 = sshll.u32 %s433, 4
          %s444 = int_to_ptr.vmem [resolvable:$true] %s443
          %449 = dma.vmem_to_hbm [thread:$0]  %s444, 512, %s442, %s430, 128, 128, 8
        $region48: #{tpu_custom_call.1} parent=31 // pred_fallthru
          _
      $region32: #{tpu_custom_call.1} parent=5 // pred_fallthru
        _
      %p450 = scmp.le.s32.totalorder 2, %s16
      // Predicated region
      $region49: #{tpu_custom_call.1} parent=5 // pred_check
        %p451 = pneg %p450
      $region50: #{tpu_custom_call.1} parent=5 // pred_check_branch
        %453 = sbr.rel (%p451) target = $region52
      $region51: #{tpu_custom_call.1} parent=5 // pred_region
        %s454 = ssub.s32 %s16, 2
        // Predicated region
        $region53: #{tpu_custom_call.1} parent=51 // pred_check
          %p455 = pneg %p113
        $region54: #{tpu_custom_call.1} parent=51 // pred_check_branch
          %457 = sbr.rel (%p455) target = $region56
        $region55: #{tpu_custom_call.1} parent=51 // pred_region
          %s458 = sand.u32 %s98, 1
          %s459 = scalar_lea.sflag [#allocation4], %s458
          %s460 = sand.u32 %s98, 1
          %s461 = smul.addr %s460, 32
          %s462 = scalar_lea.vmem [#allocation8], %s461
          %463 = dma.done %s459, 512
        $region56: #{tpu_custom_call.1} parent=51 // pred_fallthru
          _
      $region52: #{tpu_custom_call.1} parent=5 // pred_fallthru
        _
    $region6: #{tpu_custom_call.1} parent=1 // loop_footer
      %s20 = sadd.s32 1, %s16
    $region7: #{tpu_custom_call.1} parent=1 // loop_footer_branch
      %15 = sbr.rel target = $region3
    $region8: #{tpu_custom_call.1} parent=1 // loop_exit
      _
    %464 = vsyncpa [#allocation3], 1
    %s465 = scalar_lea.sflag [#allocation3], 1
    %466 = vsyncpa %s465, 1
    %467 = vsyncpa [#allocation6], 1
    %468 = vsyncpa [#allocation4], 1
    %s469 = scalar_lea.sflag [#allocation4], 1
    %470 = vsyncpa %s469, 1

</llo_original>
